<compile_context>
chip_gen: v5e
topology: v5e:2x2
jax: 0.10.0
libtpu: 0.0.40
codegen_flags: <defaults>
</compile_context>

<pallas_src>
import functools

import jax
import jax.numpy as jnp
from jax.experimental import pallas as pl
from jax.experimental.pallas import tpu as pltpu

_LANES = 128
_SUBLANES = 8
# Target ~2 MiB per input block (feedback: 1-2 MiB tiles reach ~85% of HBM
# roofline vs ~60% at 128 KiB).
_TARGET_BLOCK_BYTES = 2 * 1024 * 1024


def _exp_layer_kernel(kappa_ref, x_ref, o_ref, *, binary):
    # kappa_ref: (1, 1) f32 in SMEM (scalar vMF_kappa parameter)
    # x_ref / o_ref: (tile_rows, 128) tiles in VMEM, native dtype
    kappa = kappa_ref[0, 0]
    x = x_ref[...].astype(jnp.float32)        # widen in-register (free on VPU)
    y = jnp.exp(kappa * x)                    # EUP
    if binary:
        y = jnp.where(x > 0.55, y, 0.0)       # single select, one VPU op
    o_ref[...] = y.astype(o_ref.dtype)


def exp_layer(x, vmf_kappa, binary=False):
    """Pallas implementation of ExpLayer.forward.

    x:          floating array, any shape (e.g. NCHW [N, C, H, W]).
    vmf_kappa:  array of shape (1,) — the nn.Parameter.
    binary:     static Python bool, selects the masked branch.
    """
    x = jnp.asarray(x)
    if not jnp.issubdtype(x.dtype, jnp.floating):
        x = x.astype(jnp.float32)
    dtype = x.dtype
    itemsize = jnp.dtype(dtype).itemsize
    orig_shape = x.shape
    n_elem = x.size

    # Row geometry: (rows, 128) slab, rows a multiple of 8.
    chunk = _SUBLANES * _LANES
    rows = -(-n_elem // chunk) * _SUBLANES            # ceil to (8,128) tiles

    # Block size: ~2 MiB of the native dtype per input tile (multiple of 8
    # rows by construction), capped at the whole array.
    tile_rows_max = max(_SUBLANES, _TARGET_BLOCK_BYTES // (_LANES * itemsize))
    tile_rows_max -= tile_rows_max % _SUBLANES
    tile_rows = min(tile_rows_max, rows)

    num_tiles = -(-rows // tile_rows)
    total_rows = num_tiles * tile_rows
    total_elems = total_rows * _LANES

    # Single pad op (no concatenate chains); skipped entirely when aligned.
    flat = x.reshape(-1)
    pad = total_elems - n_elem
    if pad:
        flat = jnp.pad(flat, (0, pad))
    x2d = flat.reshape(total_rows, _LANES)

    kappa2d = jnp.asarray(vmf_kappa, jnp.float32).reshape(1, 1)

    kernel = functools.partial(_exp_layer_kernel, binary=binary)

    out2d = pl.pallas_call(
        kernel,
        out_shape=jax.ShapeDtypeStruct((total_rows, _LANES), dtype),
        grid_spec=pltpu.PrefetchScalarGridSpec(
            num_scalar_prefetch=0,
            grid=(num_tiles,),
            in_specs=[
                pl.BlockSpec(memory_space=pltpu.SMEM),            # kappa scalar
                pl.BlockSpec((tile_rows, _LANES), lambda i: (i, 0)),
            ],
            out_specs=pl.BlockSpec((tile_rows, _LANES), lambda i: (i, 0)),
        ),
        compiler_params=pltpu.CompilerParams(
            dimension_semantics=("parallel",)),
    )(kappa2d, x2d)

    # Un-pad: avoid the slice-copy entirely when no padding was added.
    if pad:
        out = out2d.reshape(-1)[:n_elem].reshape(orig_shape)
    else:
        out = out2d.reshape(orig_shape)
    return out


def exp_layer_ref(x, vmf_kappa, binary=False):
    """Pure-JAX reference matching the PyTorch module (compute in f32)."""
    x = jnp.asarray(x)
    if not jnp.issubdtype(x.dtype, jnp.floating):
        x = x.astype(jnp.float32)
    kappa = jnp.asarray(vmf_kappa, jnp.float32).reshape(())
    xf = x.astype(jnp.float32)
    y = jnp.exp(kappa * xf)
    if binary:
        y = jnp.where(xf > 0.55, y, 0.0)
    return y.astype(x.dtype)


if __name__ == "__main__":
    key = jax.random.PRNGKey(0)
    kx, kx2, kx3 = jax.random.split(key, 3)

    # Deterministic parameter init: vMF_kappa = 30.0 (typical vMF concentration).
    vmf_kappa = jnp.array([30.0], dtype=jnp.float32)

    # 1) Small NCHW input consistent with a conv-feature-map consumer (f32).
    x = jax.random.uniform(kx, (2, 4, 16, 16), jnp.float32, minval=0.0, maxval=1.0)

    y = jax.block_until_ready(exp_layer(x, vmf_kappa, binary=False))
    y_ref = exp_layer_ref(x, vmf_kappa, binary=False)
    assert y.shape == x.shape and y.dtype == jnp.float32
    assert jnp.allclose(y, y_ref, rtol=1e-5, atol=1e-5)

    # Binary branch (binary=True) — the .cuda(device_ids[0]) in the PyTorch
    # code is a device-placement detail with no semantic effect here.
    yb = jax.block_until_ready(exp_layer(x, vmf_kappa, binary=True))
    yb_ref = exp_layer_ref(x, vmf_kappa, binary=True)
    assert jnp.allclose(yb, yb_ref, rtol=1e-5, atol=1e-5)

    # 2) Ragged shape (exercises the single-pad path).
    xr = jax.random.uniform(kx2, (3, 5, 17, 19), jnp.float32, minval=0.0, maxval=1.0)
    yr = jax.block_until_ready(exp_layer(xr, vmf_kappa, binary=True))
    yr_ref = exp_layer_ref(xr, vmf_kappa, binary=True)
    assert yr.shape == xr.shape
    assert jnp.allclose(yr, yr_ref, rtol=1e-5, atol=1e-5)

    # 3) bf16 passthrough (native-dtype HBM traffic, f32 compute in-register).
    xb = jax.random.uniform(kx3, (2, 8, 32, 32), jnp.float32,
                            minval=0.0, maxval=1.0).astype(jnp.bfloat16)
    ybf = jax.block_until_ready(exp_layer(xb, vmf_kappa, binary=False))
    ybf_ref = exp_layer_ref(xb, vmf_kappa, binary=False)
    assert ybf.dtype == jnp.bfloat16
    assert jnp.allclose(ybf.astype(jnp.float32), ybf_ref.astype(jnp.float32),
                        rtol=2e-2, atol=2e-2)

    print("KERNEL_OK")
</pallas_src>

<mosaic_0001>
module attributes {stable_mosaic.version = 11 : i64} {
  func.func @_exp_layer_kernel(%arg0: i32, %arg1: memref<1x1xf32, #tpu.memory_space<smem>>, %arg2: memref<16x128xf32, #tpu.memory_space<vmem>>, %arg3: memref<16x128xf32, #tpu.memory_space<vmem>>) attributes {dimension_semantics = [#tpu.dimension_semantics<parallel>], iteration_bounds = array<i64: 1>, scalar_prefetch = 0 : i64, scratch_operands = 0 : i64, tpu.core_type = #tpu.core_type<tc>, window_params = [{transform_indices = @transform_0, window_bounds = array<i64: 1, 1>}, {transform_indices = @transform_1, window_bounds = array<i64: 16, 128>}, {transform_indices = @transform_2, window_bounds = array<i64: 16, 128>}]} {
    %c0 = arith.constant 0 : index
    %c0_0 = arith.constant 0 : index
    %0 = memref.load %arg1[%c0, %c0_0] : memref<1x1xf32, #tpu.memory_space<smem>>
    %c0_1 = arith.constant 0 : index
    %c0_2 = arith.constant 0 : index
    %1 = vector.load %arg2[%c0_1, %c0_2] : memref<16x128xf32, #tpu.memory_space<vmem>>, vector<16x128xf32>
    %2 = vector.broadcast %0 : f32 to vector<16x128xf32>
    %3 = arith.mulf %2, %1 : vector<16x128xf32>
    %4 = math.exp %3 : vector<16x128xf32>
    %c0_3 = arith.constant 0 : index
    %c0_4 = arith.constant 0 : index
    %5 = vector.load %arg3[%c0_3, %c0_4] : memref<16x128xf32, #tpu.memory_space<vmem>>, vector<16x128xf32>
    tpu.vector_store %arg3[%c0_3, %c0_4], %4 {strides = array<i32>} : memref<16x128xf32, #tpu.memory_space<vmem>>, vector<16x128xf32>,
    return
  }
  func.func @transform_0(%arg0: i32) -> (i32, i32) {
    %c0_i32 = arith.constant 0 : i32
    %c0_i32_0 = arith.constant 0 : i32
    %c0_i32_1 = arith.constant 0 : i32
    return %c0_i32, %c0_i32_0 : i32, i32
  }
  func.func @transform_1(%arg0: i32) -> (i32, i32) {
    %c0_i32 = arith.constant 0 : i32
    %c0_i32_0 = arith.constant 0 : i32
    return %arg0, %c0_i32 : i32, i32
  }
  func.func @transform_2(%arg0: i32) -> (i32, i32) {
    %c0_i32 = arith.constant 0 : i32
    %c0_i32_0 = arith.constant 0 : i32
    return %arg0, %c0_i32 : i32, i32
  }
}

</mosaic_0001>

<llo_original>
// kernel: tpu_custom_call.1
$region0: #{tpu_custom_call.1}
  #allocation0 [shape = 'u32[]', space=smem, size = 0x4, offset = 0x4, fixed_abs, tag = 'smem constant byte address 0x4 - core index']
  #allocation1 [shape = 'u32[72,128]{1,0:T(1,128)}', space=vmem, size = 0x9000, scoped, tag = 'internal scratch']
  #allocation2 [shape = 'f32[1,1]{1,0:T(1,128)S(6)}', space=smem, size = 0x200, scoped, tag = 'scoped memory for tpu_custom_call.1']
  %s0 = inlined_call_operand.<no memory space> [shape: f32[1,1], index: 0, kind: input, shape index: {}]
  %s1 = inlined_call_operand.hbm [shape: f32[16,128], index: 1, kind: input, shape index: {}]
  %s2 = inlined_call_operand.hbm [shape: f32[16,128], index: 2, kind: output, shape index: {}]
  %s3 = sld [smem:[#allocation0]]
  $region22: #{tpu_custom_call.1} parent=0
    _
  %s5 = ssub.s32 1, %s3
  %s6 = scalar_select 0, %s5, %s3
  %7 = sst [smem:[#allocation2]] %s0
  $region1: #{tpu_custom_call.1} parent=0
    #allocation3 [shape = 'u8[8192]{0}', space=vmem, size = 0x2000, scoped, tag = 'input window, operand 1, single buffered']
    #allocation4 [shape = 's32[1]{0}', space=sflag, size = 0x4, scoped, tag = 'scoped memory for tpu_custom_call.1']
    #allocation5 [shape = 's32[1]{0}', space=sflag, size = 0x4, scoped, tag = 'scoped memory for tpu_custom_call.1']
    #allocation6 [shape = 'u8[8192]{0}', space=vmem, size = 0x2000, scoped, tag = 'output window, operand 0, single buffered']
    %8 = vsyncpa [#allocation4], 0
    %9 = vsyncpa [#allocation5], 0
    // Predicated region
    $region2: #{tpu_custom_call.1} parent=1 // pred_check
      _
    $region3: #{tpu_custom_call.1} parent=1 // pred_check_branch
      %11 = sbr.rel (0) target = $region5
    $region4: #{tpu_custom_call.1} parent=1 // pred_region
      _
    $region5: #{tpu_custom_call.1} parent=1 // pred_fallthru
      _
    // Predicated region
    $region6: #{tpu_custom_call.1} parent=1 // pred_check
      _
    $region7: #{tpu_custom_call.1} parent=1 // pred_check_branch
      %13 = sbr.rel (0) target = $region9
    $region8: #{tpu_custom_call.1} parent=1 // pred_region
      %15 = vsyncadd [#allocation4], 0
      %s16 = sshll.u32 %s1, 4
      %s17 = int_to_ptr.hbm [resolvable:$true] %s16
      %s18 = sshll.u32 [#allocation3], 4
      %s19 = int_to_ptr.vmem [resolvable:$true] %s18
      %24 = dma.hbm_to_vmem [thread:$0]  %s17, 256, %s19, [#allocation4], 128, 128, 8
    $region9: #{tpu_custom_call.1} parent=1 // pred_fallthru
      _
    // Predicated region
    $region10: #{tpu_custom_call.1} parent=1 // pred_check
      _
    $region11: #{tpu_custom_call.1} parent=1 // pred_check_branch
      %26 = sbr.rel (0) target = $region13
    $region12: #{tpu_custom_call.1} parent=1 // pred_region
      %28 = dma.done [#allocation4], 256
    $region13: #{tpu_custom_call.1} parent=1 // pred_fallthru
      _
    %s29 = sld [smem:[#allocation2]]
    %v30 = vld [vmem:[#allocation3] sm:$0xff]
    %v31 = vld [vmem:[#allocation3 + $0x8] sm:$0xff]
    %v32 = vstv %s29
    %v33 = vmul.f32 %v32, %v30
    %v34 = vmul.f32 %v32, %v31
    %v35 = vmul.f32 %v33, 1.442695
    %v36 = vpow.pop %v35
    %v37 = vmul.f32 %v34, 1.442695
    %v38 = vpow.pop %v37
    %39 = vst [vmem:[#allocation6] sm:$0xff] %v36
    %40 = vst [vmem:[#allocation6 + $0x8] sm:$0xff] %v38
    // Predicated region
    $region14: #{tpu_custom_call.1} parent=1 // pred_check
      _
    $region15: #{tpu_custom_call.1} parent=1 // pred_check_branch
      %42 = sbr.rel (0) target = $region17
    $region16: #{tpu_custom_call.1} parent=1 // pred_region
      %44 = vsyncadd [#allocation5], 0
      %s45 = sshll.u32 [#allocation6], 4
      %s46 = int_to_ptr.vmem [resolvable:$true] %s45
      %s47 = sshll.u32 %s2, 4
      %s48 = int_to_ptr.hbm [resolvable:$true] %s47
      %53 = dma.vmem_to_hbm [thread:$0]  %s46, 256, %s48, [#allocation5], 128, 128, 8
    $region17: #{tpu_custom_call.1} parent=1 // pred_fallthru
      _
    // Predicated region
    $region18: #{tpu_custom_call.1} parent=1 // pred_check
      _
    $region19: #{tpu_custom_call.1} parent=1 // pred_check_branch
      %55 = sbr.rel (0) target = $region21
    $region20: #{tpu_custom_call.1} parent=1 // pred_region
      %57 = dma.done [#allocation5], 256
    $region21: #{tpu_custom_call.1} parent=1 // pred_fallthru
      _
    %58 = vsyncpa [#allocation4], 1
    %59 = vsyncpa [#allocation5], 1

</llo_original>
